<compile_context>
chip_gen: v5e
topology: v5e:2x2
jax: 0.10.0
libtpu: 0.0.40
codegen_flags: <defaults>
</compile_context>

<pallas_src>
import functools

import jax
import jax.numpy as jnp
from jax.experimental import pallas as pl
from jax.experimental.pallas import tpu as pltpu


def _round_up(a, b):
    return (a + b - 1) // b * b


def _round_down(a, b):
    return a // b * b


def _device_defaults():
    """Returns (target_block_bytes, num_tensorcores_per_chip)."""
    kind = ""
    try:
        kind = jax.devices()[0].device_kind.lower()
    except Exception:  # pragma: no cover - defensive; fall back to safe defaults
        pass
    if "v7" in kind:
        return 4 << 20, 2     # 4x4 MiB buffers << 32 MiB default scoped VMEM
    if "v6" in kind:
        return 4 << 20, 1     # near the measured roofline plateau on v6e
    return 2 << 20, 1         # v5e / unknown: 4x2 MiB fits 16 MiB default scoped VMEM


def _biasfree_ln_kernel(x_ref, w_ref, o_ref):
    # x_ref: (tile_rows, C)   w_ref: (1, C) f32   o_ref: (tile_rows, C)
    x = x_ref[...].astype(jnp.float32)
    mu = jnp.mean(x, axis=-1, keepdims=True)
    xc = x - mu
    var = jnp.mean(xc * xc, axis=-1, keepdims=True)      # unbiased=False
    inv = jax.lax.rsqrt(var + 1e-5)
    # Matches PyTorch: x (NOT mean-centered) / sqrt(var + eps) * weight
    o_ref[...] = (x * inv * w_ref[...]).astype(o_ref.dtype)


@functools.partial(jax.jit, static_argnames=("target_block_bytes",))
def biasfree_layernorm(x, weight, *, target_block_bytes=None):
    """x: (..., C), weight: (C,). Returns same shape/dtype as x."""
    orig_shape = x.shape
    C = orig_shape[-1]
    assert weight.shape == (C,)

    x2d = x.reshape(-1, C)
    R = x2d.shape[0]

    default_bytes, num_cores = _device_defaults()
    block_bytes = target_block_bytes if target_block_bytes is not None else default_bytes

    itemsize = jnp.dtype(x.dtype).itemsize
    # Sublane packing: 8 rows per vreg tile for 32-bit, 16 for 16-bit, 32 for 8-bit.
    packing = max(8, 32 // max(1, itemsize))

    # Row tile: ~block_bytes of x per block, rounded to the sublane packing.
    tile_rows = max(packing, _round_down(block_bytes // (itemsize * C), packing))
    # Don't allocate a tile (much) larger than the whole input.
    tile_rows = min(tile_rows, _round_up(R, packing))

    # Only on multi-TensorCore chips: keep >=2 grid steps per core so each core
    # still has prefetch overlap while the grid shards across cores.
    if num_cores > 1:
        min_steps = 2 * num_cores
        per_step = _round_up(pl.cdiv(R, min_steps), packing)
        tile_rows = min(tile_rows, max(packing, per_step))

    grid = (pl.cdiv(R, tile_rows),)

    w2d = weight.astype(jnp.float32).reshape(1, C)

    out2d = pl.pallas_call(
        _biasfree_ln_kernel,
        out_shape=jax.ShapeDtypeStruct((R, C), x.dtype),
        grid_spec=pltpu.PrefetchScalarGridSpec(
            num_scalar_prefetch=0,
            grid=grid,
            in_specs=[
                # Last dim spans the full array -> exempt from 128-divisibility;
                # rows are blocked (multiple of the sublane packing).
                pl.BlockSpec((tile_rows, C), lambda i: (i, 0)),
                pl.BlockSpec((1, C), lambda i: (0, 0)),
            ],
            out_specs=pl.BlockSpec((tile_rows, C), lambda i: (i, 0)),
        ),
        compiler_params=pltpu.CompilerParams(
            dimension_semantics=("parallel",),
        ),
    )(x2d, w2d)

    return out2d.reshape(orig_shape)


def _reference(x, weight):
    xf = x.astype(jnp.float32)
    mu = jnp.mean(xf, axis=-1, keepdims=True)
    var = jnp.mean((xf - mu) ** 2, axis=-1, keepdims=True)
    return (xf / jnp.sqrt(var + 1e-5) * weight.astype(jnp.float32)).astype(x.dtype)


if __name__ == "__main__":
    key = jax.random.PRNGKey(0)
    k1, k2, k3, k4 = jax.random.split(key, 4)

    # Primary case: (batch, tokens, hidden) — hidden is the normalized dim.
    B, S, C = 2, 8, 32
    x = jax.random.normal(k1, (B, S, C), dtype=jnp.float32)
    weight = jnp.ones((C,), dtype=jnp.float32)  # matches nn.Parameter(torch.ones(C))

    out = jax.block_until_ready(biasfree_layernorm(x, weight))
    ref = _reference(x, weight)
    assert out.shape == x.shape and out.dtype == x.dtype
    assert jnp.allclose(out, ref, atol=1e-4, rtol=1e-4)

    # Secondary case: odd channel count (48), non-trivial weight.
    x2 = jax.random.normal(k2, (3, 5, 48), dtype=jnp.float32)
    w2 = 1.0 + 0.1 * jax.random.normal(k3, (48,), dtype=jnp.float32)
    out2 = jax.block_until_ready(biasfree_layernorm(x2, w2))
    ref2 = _reference(x2, w2)
    assert out2.shape == x2.shape and out2.dtype == x2.dtype
    assert jnp.allclose(out2, ref2, atol=1e-4, rtol=1e-4)

    # Third case: tiny block budget to force a multi-step grid with a ragged
    # final row block (R = 201 rows, tile = 16 rows -> 13 steps, last partial).
    x3 = jax.random.normal(k4, (3, 67, 48), dtype=jnp.float32)
    out3 = jax.block_until_ready(biasfree_layernorm(x3, w2, target_block_bytes=4096))
    ref3 = _reference(x3, w2)
    assert out3.shape == x3.shape and out3.dtype == x3.dtype
    assert jnp.allclose(out3, ref3, atol=1e-4, rtol=1e-4)

    print("KERNEL_OK")
</pallas_src>

<mosaic_0001>
module attributes {stable_mosaic.version = 11 : i64} {
  func.func @_biasfree_ln_kernel(%arg0: i32, %arg1: memref<16x32xf32, #tpu.memory_space<vmem>>, %arg2: memref<1x32xf32, #tpu.memory_space<vmem>>, %arg3: memref<16x32xf32, #tpu.memory_space<vmem>>) attributes {dimension_semantics = [#tpu.dimension_semantics<parallel>], iteration_bounds = array<i64: 1>, scalar_prefetch = 0 : i64, scratch_operands = 0 : i64, tpu.core_type = #tpu.core_type<tc>, window_params = [{transform_indices = @transform_0, window_bounds = array<i64: 16, 32>}, {pipeline_mode = #tpu.pipeline_mode<synchronous>, transform_indices = @transform_1, window_bounds = array<i64: 1, 32>}, {transform_indices = @transform_2, window_bounds = array<i64: 16, 32>}]} {
    %c0 = arith.constant 0 : index
    %c0_0 = arith.constant 0 : index
    %0 = vector.load %arg1[%c0, %c0_0] : memref<16x32xf32, #tpu.memory_space<vmem>>, vector<16x32xf32>
    %cst = arith.constant dense<0.000000e+00> : vector<16xf32>
    %1 = vector.multi_reduction <add>, %0, %cst [1] : vector<16x32xf32> to vector<16xf32>
    %2 = vector.shape_cast %1 : vector<16xf32> to vector<16x1xf32>
    %cst_1 = arith.constant 3.200000e+01 : f32
    %3 = vector.broadcast %cst_1 : f32 to vector<16x1xf32>
    %4 = arith.divf %2, %3 : vector<16x1xf32>
    %5 = vector.broadcast %4 : vector<16x1xf32> to vector<16x32xf32>
    %6 = arith.subf %0, %5 : vector<16x32xf32>
    %7 = arith.mulf %6, %6 : vector<16x32xf32>
    %cst_2 = arith.constant dense<0.000000e+00> : vector<16xf32>
    %8 = vector.multi_reduction <add>, %7, %cst_2 [1] : vector<16x32xf32> to vector<16xf32>
    %9 = vector.shape_cast %8 : vector<16xf32> to vector<16x1xf32>
    %cst_3 = arith.constant 3.200000e+01 : f32
    %10 = vector.broadcast %cst_3 : f32 to vector<16x1xf32>
    %11 = arith.divf %9, %10 : vector<16x1xf32>
    %cst_4 = arith.constant 9.99999974E-6 : f32
    %12 = vector.broadcast %cst_4 : f32 to vector<16x1xf32>
    %13 = arith.addf %11, %12 : vector<16x1xf32>
    %14 = math.rsqrt %13 : vector<16x1xf32>
    %15 = vector.broadcast %14 : vector<16x1xf32> to vector<16x32xf32>
    %16 = arith.mulf %0, %15 : vector<16x32xf32>
    %c0_5 = arith.constant 0 : index
    %c0_6 = arith.constant 0 : index
    %17 = vector.load %arg2[%c0_5, %c0_6] : memref<1x32xf32, #tpu.memory_space<vmem>>, vector<1x32xf32>
    %18 = vector.broadcast %17 : vector<1x32xf32> to vector<16x32xf32>
    %19 = arith.mulf %16, %18 : vector<16x32xf32>
    %c0_7 = arith.constant 0 : index
    %c0_8 = arith.constant 0 : index
    %20 = vector.load %arg3[%c0_7, %c0_8] : memref<16x32xf32, #tpu.memory_space<vmem>>, vector<16x32xf32>
    tpu.vector_store %arg3[%c0_7, %c0_8], %19 {strides = array<i32>} : memref<16x32xf32, #tpu.memory_space<vmem>>, vector<16x32xf32>,
    return
  }
  func.func @transform_0(%arg0: i32) -> (i32, i32) {
    %c0_i32 = arith.constant 0 : i32
    %c0_i32_0 = arith.constant 0 : i32
    return %arg0, %c0_i32 : i32, i32
  }
  func.func @transform_1(%arg0: i32) -> (i32, i32) {
    %c0_i32 = arith.constant 0 : i32
    %c0_i32_0 = arith.constant 0 : i32
    %c0_i32_1 = arith.constant 0 : i32
    return %c0_i32, %c0_i32_0 : i32, i32
  }
  func.func @transform_2(%arg0: i32) -> (i32, i32) {
    %c0_i32 = arith.constant 0 : i32
    %c0_i32_0 = arith.constant 0 : i32
    return %arg0, %c0_i32 : i32, i32
  }
}

</mosaic_0001>

<llo_original>
// kernel: biasfree_layernorm.1
$region0: #{biasfree_layernorm.1}
  #allocation0 [shape = 'u32[]', space=smem, size = 0x4, offset = 0x4, fixed_abs, tag = 'smem constant byte address 0x4 - core index']
  #allocation1 [shape = 'u32[72,128]{1,0:T(1,128)}', space=vmem, size = 0x9000, scoped, tag = 'internal scratch']
  %s0 = inlined_call_operand.hbm [shape: f32[16,32], index: 0, kind: input, shape index: {}]
  %s1 = inlined_call_operand.vmem [shape: f32[1,32], index: 1, kind: input, shape index: {}]
  %s2 = inlined_call_operand.hbm [shape: f32[16,32], index: 2, kind: output, shape index: {}]
  %s3 = sld [smem:[#allocation0]]
  $region22: #{biasfree_layernorm.1} parent=0
    _
  %s5 = ssub.s32 1, %s3
  %s6 = scalar_select 0, %s5, %s3
  $region1: #{biasfree_layernorm.1} parent=0
    #allocation2 [shape = 'u8[8192]{0}', space=vmem, size = 0x2000, scoped, tag = 'input window, operand 0, single buffered']
    #allocation3 [shape = 's32[1]{0}', space=sflag, size = 0x4, scoped, tag = 'scoped memory for biasfree_layernorm.1']
    #allocation4 [shape = 's32[1]{0}', space=sflag, size = 0x4, scoped, tag = 'scoped memory for biasfree_layernorm.1']
    #allocation5 [shape = 'u8[8192]{0}', space=vmem, size = 0x2000, scoped, tag = 'output window, operand 0, single buffered']
    %7 = vsyncpa [#allocation3], 0
    %8 = vsyncpa [#allocation4], 0
    // Predicated region
    $region2: #{biasfree_layernorm.1} parent=1 // pred_check
      _
    $region3: #{biasfree_layernorm.1} parent=1 // pred_check_branch
      %10 = sbr.rel (0) target = $region5
    $region4: #{biasfree_layernorm.1} parent=1 // pred_region
      %12 = vsyncadd [#allocation3], 0
      %s13 = sshll.u32 %s0, 4
      %s14 = int_to_ptr.hbm [resolvable:$true] %s13
      %s15 = sshll.u32 [#allocation2], 4
      %s16 = int_to_ptr.vmem [resolvable:$true] %s15
      %21 = dma.hbm_to_vmem [thread:$0]  %s14, 256, %s16, [#allocation3], 128, 128, 8
    $region5: #{biasfree_layernorm.1} parent=1 // pred_fallthru
      _
    // Predicated region
    $region6: #{biasfree_layernorm.1} parent=1 // pred_check
      _
    $region7: #{biasfree_layernorm.1} parent=1 // pred_check_branch
      %23 = sbr.rel (0) target = $region9
    $region8: #{biasfree_layernorm.1} parent=1 // pred_region
      _
    $region9: #{biasfree_layernorm.1} parent=1 // pred_fallthru
      _
    // Predicated region
    $region10: #{biasfree_layernorm.1} parent=1 // pred_check
      _
    $region11: #{biasfree_layernorm.1} parent=1 // pred_check_branch
      %25 = sbr.rel (0) target = $region13
    $region12: #{biasfree_layernorm.1} parent=1 // pred_region
      %27 = dma.done [#allocation3], 256
    $region13: #{biasfree_layernorm.1} parent=1 // pred_fallthru
      _
    %v28 = vld [vmem:[#allocation2] sm:$0xff]
    %v29 = vld [vmem:[#allocation2 + $0x8] sm:$0xff]
    %vm30 = vcmask 261120
    %v31 = vsel %vm30, %v28, 0.0
    %32 = vadd.xlane.f32.xlu0 %v31
    %v33 = vpop.xlane.xlu0 %32
    %v34 = vsel %vm30, %v29, 0.0
    %35 = vadd.xlane.f32.xlu0 %v34
    %v36 = vpop.xlane.xlu0 %35
    %v37 = vrcp.pop 32.0
    %v38 = vmul.f32 32.0, %v37
    %v39 = vsub.f32 1.0, %v38
    %v40 = vmul.f32 %v37, %v39
    %v41 = vadd.f32 %v37, %v40
    %vm42 = vweird.f32 %v37
    %v43 = vsel %vm42, %v37, %v41
    %v44 = vmul.f32 %v33, %v43
    %v45 = vmul.f32 %v36, %v43
    %v46 = vsub.f32 %v28, %v44
    %v47 = vsub.f32 %v29, %v45
    %v48 = vmul.f32 %v46, %v46
    %v49 = vmul.f32 %v47, %v47
    %v50 = vsel %vm30, %v48, 0.0
    %51 = vadd.xlane.f32.xlu0 %v50
    %v52 = vpop.xlane.xlu0 %51
    %v53 = vsel %vm30, %v49, 0.0
    %54 = vadd.xlane.f32.xlu0 %v53
    %v55 = vpop.xlane.xlu0 %54
    %v56 = vmul.f32 %v52, %v43
    %v57 = vmul.f32 %v55, %v43
    %v58 = vadd.f32 %v56, 1e-05
    %v59 = vadd.f32 %v57, 1e-05
    %v60 = vrsqrt.pop %v58
    %v61 = vmul.f32 %v60, %v58
    %v62 = vmul.f32 %v61, %v60
    %v63 = vmul.f32 0.5, %v62
    %v64 = vsub.f32 1.5, %v63
    %v65 = vmul.f32 %v60, %v64
    %vm66 = vweird.f32 %v58
    %vm67 = vweird.f32 %v60
    %vm68 = vmor %vm66, %vm67
    %v69 = vsel %vm68, %v60, %v65
    %v70 = vrsqrt.pop %v59
    %v71 = vmul.f32 %v70, %v59
    %v72 = vmul.f32 %v71, %v70
    %v73 = vmul.f32 0.5, %v72
    %v74 = vsub.f32 1.5, %v73
    %v75 = vmul.f32 %v70, %v74
    %vm76 = vweird.f32 %v59
    %vm77 = vweird.f32 %v70
    %vm78 = vmor %vm76, %vm77
    %v79 = vsel %vm78, %v70, %v75
    %v80 = vmul.f32 %v28, %v69
    %v81 = vmul.f32 %v29, %v79
    %v82 = vld [vmem:[%s1] sm:$0x1]
    %v84 = vperm.slane %v82, 0
    %v86 = vmul.f32 %v80, %v84
    %v87 = vmul.f32 %v81, %v84
    %88 = vst.msk [vmem:[#allocation5] sm:$0xff] %vm30, %v86
    %89 = vst.msk [vmem:[#allocation5 + $0x8] sm:$0xff] %vm30, %v87
    // Predicated region
    $region14: #{biasfree_layernorm.1} parent=1 // pred_check
      _
    $region15: #{biasfree_layernorm.1} parent=1 // pred_check_branch
      %91 = sbr.rel (0) target = $region17
    $region16: #{biasfree_layernorm.1} parent=1 // pred_region
      %93 = vsyncadd [#allocation4], 0
      %s94 = sshll.u32 [#allocation5], 4
      %s95 = int_to_ptr.vmem [resolvable:$true] %s94
      %s96 = sshll.u32 %s2, 4
      %s97 = int_to_ptr.hbm [resolvable:$true] %s96
      %102 = dma.vmem_to_hbm [thread:$0]  %s95, 256, %s97, [#allocation4], 128, 128, 8
    $region17: #{biasfree_layernorm.1} parent=1 // pred_fallthru
      _
    // Predicated region
    $region18: #{biasfree_layernorm.1} parent=1 // pred_check
      _
    $region19: #{biasfree_layernorm.1} parent=1 // pred_check_branch
      %104 = sbr.rel (0) target = $region21
    $region20: #{biasfree_layernorm.1} parent=1 // pred_region
      %106 = dma.done [#allocation4], 256
    $region21: #{biasfree_layernorm.1} parent=1 // pred_fallthru
      _
    %107 = vsyncpa [#allocation3], 1
    %108 = vsyncpa [#allocation4], 1

</llo_original>
